<compile_context>
chip_gen: v7x
topology: tpu7x:2x2x1
jax: 0.10.0
libtpu: 0.0.40
codegen_flags: <defaults>
</compile_context>

<pallas_src>
import functools

import jax
import jax.numpy as jnp
from jax.experimental import pallas as pl
from jax.experimental.pallas import tpu as pltpu


# ---------------------------------------------------------------------------
# Kernel
# ---------------------------------------------------------------------------
def _ffn_kernel(x_ref, w1_ref, b1_ref, w2_ref, b2_ref,
                g0_ref, be0_ref, g2_ref, be2_ref, o_ref,
                *, eps, d_true, need_mask):
    x = x_ref[...].astype(jnp.float32)
    d_pad = x.shape[-1]
    inv_d = 1.0 / float(d_true)

    if need_mask:
        lane = jax.lax.broadcasted_iota(jnp.int32, (1, d_pad), 1)
        mask = (lane < d_true).astype(jnp.float32)
    else:
        mask = None

    def layernorm(v, g, b):
        # Padded lanes of v are zero (guaranteed by the wrapper / zero-padded
        # weight columns), so sum(v)/d_true is the true mean.
        mu = jnp.sum(v, axis=-1, keepdims=True) * inv_d
        c = v - mu
        if mask is not None:
            c = c * mask                      # exclude padded lanes from var
        var = jnp.sum(c * c, axis=-1, keepdims=True) * inv_d
        # g/b are zero in padded lanes -> padded output lanes stay zero.
        return c * jax.lax.rsqrt(var + eps) * g + b

    def gelu(v):  # exact erf-based GELU (nn.GELU default); gelu(0) == 0
        return 0.5 * v * (1.0 + jax.lax.erf(v * (2.0 ** -0.5)))

    # --- LayerNorm 0 ---
    h = layernorm(x, g0_ref[...], be0_ref[...])

    # --- Linear 1 (dim_ff -> dim_ff), MXU matmul, f32 accumulation ---
    h = jnp.dot(h.astype(w1_ref.dtype), w1_ref[...],
                preferred_element_type=jnp.float32) + b1_ref[...]

    # drop1: identity at inference   # TODO(synk): training-mode dropout not implemented
    h = gelu(h)

    # --- Linear 2 (dim_ff -> dim_ff) ---
    h = jnp.dot(h.astype(w2_ref.dtype), w2_ref[...],
                preferred_element_type=jnp.float32) + b2_ref[...]

    # --- LayerNorm 2 ---
    h = layernorm(h, g2_ref[...], be2_ref[...])

    # drop2: identity at inference
    h = gelu(h)

    o_ref[...] = h.astype(o_ref.dtype)


# ---------------------------------------------------------------------------
# Wrapper
# ---------------------------------------------------------------------------
def _const_spec(shape):
    """BlockSpec for blocks whose index never changes across the grid:
    single-buffer them so they don't waste VMEM on a second buffer."""
    index_map = lambda i: (0,) * len(shape)
    try:
        return pl.BlockSpec(shape, index_map, pipeline_mode=pl.Buffered(1))
    except TypeError:  # pipeline_mode kwarg unavailable on this jax version
        return pl.BlockSpec(shape, index_map)


def feed_forward_block(x, params, *, eps=1e-5, tile_rows=256,
                       matmul_dtype=jnp.bfloat16):
    """x: (batch, seq, dim_ff) float32.  params: dict of weights (see init_params)."""
    b, s, d = x.shape
    rows = b * s
    x2 = x.reshape(rows, d)

    # ---- lane-dense last dim: pad dim_ff up to a multiple of 128 ----
    d_pad = pl.cdiv(d, 128) * 128
    need_mask = d_pad != d

    def pad_mat(a):   # (d, d) -> (d_pad, d_pad), zero-padded
        return a if not need_mask else jnp.pad(a, ((0, d_pad - d), (0, d_pad - d)))

    def pad_vec(a):   # (1, d) -> (1, d_pad), zero-padded
        return a if not need_mask else jnp.pad(a, ((0, 0), (0, d_pad - d)))

    w1 = pad_mat(params["w1"]).astype(matmul_dtype)
    w2 = pad_mat(params["w2"]).astype(matmul_dtype)
    b1, b2 = pad_vec(params["b1"]), pad_vec(params["b2"])
    g0, be0 = pad_vec(params["g0"]), pad_vec(params["be0"])
    g2, be2 = pad_vec(params["g2"]), pad_vec(params["be2"])

    if need_mask:
        x2 = jnp.pad(x2, ((0, 0), (0, d_pad - d)))

    # ---- row tile: large (MXU-shaped), capped by input size and VMEM budget ----
    wbytes = jnp.dtype(matmul_dtype).itemsize

    def footprint(t):
        return (2 * d_pad * d_pad * wbytes        # w1, w2 (single-buffered)
                + 6 * d_pad * 4                   # biases / LN affine params
                + 2 * 2 * t * d_pad * 4           # x + out tiles, double-buffered
                + 6 * t * d_pad * 4)              # headroom for f32 intermediates

    tile = max(8, min(int(tile_rows), pl.cdiv(rows, 8) * 8))
    tile = max(8, (tile // 8) * 8)
    while tile > 8 and footprint(tile) > 48 * 2**20:
        tile = max(8, (tile // 2 // 8) * 8)
    # TODO(synk): for dim_ff so large that the two weight matrices alone exceed
    # VMEM (bf16 d >~ 4k), switch to a 2-D grid tiling w1 over N / w2 over K
    # with a VMEM accumulator (pl.when init/finalize) instead of weight-resident.

    rows_p = pl.cdiv(rows, tile) * tile
    if rows_p != rows:
        x2 = jnp.pad(x2, ((0, rows_p - rows), (0, 0)))

    vmem_limit = int(min(max(2 * footprint(tile), 32 * 2**20), 64 * 2**20))

    row_spec = pl.BlockSpec((tile, d_pad), lambda i: (i, 0))
    mat_spec = _const_spec((d_pad, d_pad))
    vec_spec = _const_spec((1, d_pad))

    out = pl.pallas_call(
        functools.partial(_ffn_kernel, eps=eps, d_true=d, need_mask=need_mask),
        out_shape=jax.ShapeDtypeStruct((rows_p, d_pad), x.dtype),
        grid_spec=pltpu.PrefetchScalarGridSpec(
            num_scalar_prefetch=0,
            grid=(rows_p // tile,),
            in_specs=[row_spec,              # x
                      mat_spec, vec_spec,    # w1, b1
                      mat_spec, vec_spec,    # w2, b2
                      vec_spec, vec_spec,    # gamma0, beta0
                      vec_spec, vec_spec],   # gamma2, beta2
            out_specs=row_spec,
        ),
        compiler_params=pltpu.CompilerParams(
            dimension_semantics=("parallel",),   # row loop shardable across TCs (v7x)
            vmem_limit_bytes=vmem_limit),
    )(x2, w1, b1, w2, b2, g0, be0, g2, be2)

    return out[:rows, :d].reshape(b, s, d)


# ---------------------------------------------------------------------------
# Parameters + pure-JAX reference
# ---------------------------------------------------------------------------
def init_params(key, dim_ff):
    """Deterministic synthetic parameters. Linear weights stored as (in, out)."""
    k1, k2, k3, k4 = jax.random.split(key, 4)
    scale = 1.0 / jnp.sqrt(dim_ff)
    return {
        "w1": jax.random.uniform(k1, (dim_ff, dim_ff), jnp.float32, -scale, scale),
        "b1": jax.random.uniform(k2, (1, dim_ff), jnp.float32, -scale, scale),
        "w2": jax.random.uniform(k3, (dim_ff, dim_ff), jnp.float32, -scale, scale),
        "b2": jax.random.uniform(k4, (1, dim_ff), jnp.float32, -scale, scale),
        # LayerNorm affine params (PyTorch default init: ones / zeros)
        "g0": jnp.ones((1, dim_ff), jnp.float32),
        "be0": jnp.zeros((1, dim_ff), jnp.float32),
        "g2": jnp.ones((1, dim_ff), jnp.float32),
        "be2": jnp.zeros((1, dim_ff), jnp.float32),
    }


def _reference(x, params, eps=1e-5):
    def ln(v, g, b):
        mu = jnp.mean(v, axis=-1, keepdims=True)
        var = jnp.mean((v - mu) ** 2, axis=-1, keepdims=True)
        return (v - mu) * jax.lax.rsqrt(var + eps) * g + b

    def gelu(v):
        return 0.5 * v * (1.0 + jax.lax.erf(v / jnp.sqrt(2.0)))

    h = ln(x, params["g0"], params["be0"])
    h = h @ params["w1"] + params["b1"]
    h = gelu(h)
    h = h @ params["w2"] + params["b2"]
    h = ln(h, params["g2"], params["be2"])
    return gelu(h)


# ---------------------------------------------------------------------------
# Demo / self-test
# ---------------------------------------------------------------------------
if __name__ == "__main__":
    key = jax.random.PRNGKey(0)
    kx, kp, kx2, kp2 = jax.random.split(key, 4)

    # Small demo shape (dim_ff not a lane multiple -> exercises the pad+mask path).
    batch, seq, dim_ff = 2, 8, 32
    x = jax.random.normal(kx, (batch, seq, dim_ff), jnp.float32)
    params = init_params(kp, dim_ff)
    ref = _reference(x, params)

    # Default fast path: bf16 MXU inputs, f32 accumulation.
    out = jax.block_until_ready(feed_forward_block(x, params))
    assert out.shape == (batch, seq, dim_ff)
    assert jnp.allclose(out, ref, atol=5e-2, rtol=5e-2), "bf16 path mismatch vs reference"

    # Full-precision path: tight check.
    out_f32 = jax.block_until_ready(
        feed_forward_block(x, params, matmul_dtype=jnp.float32))
    assert jnp.allclose(out_f32, ref, atol=1e-5, rtol=1e-5), "f32 path mismatch vs reference"

    # Lane-dense dim_ff (multiple of 128 -> no padding / no mask path).
    dim_ff2 = 128
    x2 = jax.random.normal(kx2, (batch, seq, dim_ff2), jnp.float32)
    params2 = init_params(kp2, dim_ff2)
    out2 = jax.block_until_ready(
        feed_forward_block(x2, params2, matmul_dtype=jnp.float32))
    assert jnp.allclose(out2, _reference(x2, params2), atol=1e-5, rtol=1e-5), \
        "lane-dense path mismatch vs reference"

    print("KERNEL_OK")
</pallas_src>

<mosaic_0001>
module attributes {stable_mosaic.version = 11 : i64} {
  func.func @_ffn_kernel(%arg0: i32, %arg1: memref<16x128xf32, #tpu.memory_space<vmem>>, %arg2: memref<128x128xbf16, #tpu.memory_space<vmem>>, %arg3: memref<1x128xf32, #tpu.memory_space<vmem>>, %arg4: memref<128x128xbf16, #tpu.memory_space<vmem>>, %arg5: memref<1x128xf32, #tpu.memory_space<vmem>>, %arg6: memref<1x128xf32, #tpu.memory_space<vmem>>, %arg7: memref<1x128xf32, #tpu.memory_space<vmem>>, %arg8: memref<1x128xf32, #tpu.memory_space<vmem>>, %arg9: memref<1x128xf32, #tpu.memory_space<vmem>>, %arg10: memref<16x128xf32, #tpu.memory_space<vmem>>) attributes {dimension_semantics = [#tpu.dimension_semantics<parallel>], iteration_bounds = array<i64: 1>, scalar_prefetch = 0 : i64, scratch_operands = 0 : i64, tpu.core_type = #tpu.core_type<tc>, window_params = [{transform_indices = @transform_0, window_bounds = array<i64: 16, 128>}, {pipeline_mode = #tpu.pipeline_mode<synchronous>, transform_indices = @transform_1, window_bounds = array<i64: 128, 128>}, {pipeline_mode = #tpu.pipeline_mode<synchronous>, transform_indices = @transform_2, window_bounds = array<i64: 1, 128>}, {pipeline_mode = #tpu.pipeline_mode<synchronous>, transform_indices = @transform_3, window_bounds = array<i64: 128, 128>}, {pipeline_mode = #tpu.pipeline_mode<synchronous>, transform_indices = @transform_4, window_bounds = array<i64: 1, 128>}, {pipeline_mode = #tpu.pipeline_mode<synchronous>, transform_indices = @transform_5, window_bounds = array<i64: 1, 128>}, {pipeline_mode = #tpu.pipeline_mode<synchronous>, transform_indices = @transform_6, window_bounds = array<i64: 1, 128>}, {pipeline_mode = #tpu.pipeline_mode<synchronous>, transform_indices = @transform_7, window_bounds = array<i64: 1, 128>}, {pipeline_mode = #tpu.pipeline_mode<synchronous>, transform_indices = @transform_8, window_bounds = array<i64: 1, 128>}, {transform_indices = @transform_9, window_bounds = array<i64: 16, 128>}]} {
    %c0 = arith.constant 0 : index
    %c0_0 = arith.constant 0 : index
    %0 = vector.load %arg1[%c0, %c0_0] : memref<16x128xf32, #tpu.memory_space<vmem>>, vector<16x128xf32>
    %1 = tpu.iota {dimensions = array<i32: 1>} : vector<1x128xi32>
    %c32_i32 = arith.constant 32 : i32
    %2 = vector.broadcast %c32_i32 : i32 to vector<1x128xi32>
    %3 = arith.cmpi slt, %1, %2 : vector<1x128xi32>
    %4 = arith.extui %3 : vector<1x128xi1> to vector<1x128xi32>
    %5 = arith.sitofp %4 : vector<1x128xi32> to vector<1x128xf32>
    %c0_1 = arith.constant 0 : index
    %c0_2 = arith.constant 0 : index
    %6 = vector.load %arg6[%c0_1, %c0_2] : memref<1x128xf32, #tpu.memory_space<vmem>>, vector<1x128xf32>
    %c0_3 = arith.constant 0 : index
    %c0_4 = arith.constant 0 : index
    %7 = vector.load %arg7[%c0_3, %c0_4] : memref<1x128xf32, #tpu.memory_space<vmem>>, vector<1x128xf32>
    %cst = arith.constant dense<0.000000e+00> : vector<16xf32>
    %8 = vector.multi_reduction <add>, %0, %cst [1] : vector<16x128xf32> to vector<16xf32>
    %9 = vector.shape_cast %8 : vector<16xf32> to vector<16x1xf32>
    %cst_5 = arith.constant 3.125000e-02 : f32
    %10 = vector.broadcast %cst_5 : f32 to vector<16x1xf32>
    %11 = arith.mulf %9, %10 : vector<16x1xf32>
    %12 = vector.broadcast %11 : vector<16x1xf32> to vector<16x128xf32>
    %13 = arith.subf %0, %12 : vector<16x128xf32>
    %14 = vector.broadcast %5 : vector<1x128xf32> to vector<16x128xf32>
    %15 = arith.mulf %13, %14 : vector<16x128xf32>
    %16 = arith.mulf %15, %15 : vector<16x128xf32>
    %cst_6 = arith.constant dense<0.000000e+00> : vector<16xf32>
    %17 = vector.multi_reduction <add>, %16, %cst_6 [1] : vector<16x128xf32> to vector<16xf32>
    %18 = vector.shape_cast %17 : vector<16xf32> to vector<16x1xf32>
    %cst_7 = arith.constant 3.125000e-02 : f32
    %19 = vector.broadcast %cst_7 : f32 to vector<16x1xf32>
    %20 = arith.mulf %18, %19 : vector<16x1xf32>
    %cst_8 = arith.constant 9.99999974E-6 : f32
    %21 = vector.broadcast %cst_8 : f32 to vector<16x1xf32>
    %22 = arith.addf %20, %21 : vector<16x1xf32>
    %23 = math.rsqrt %22 : vector<16x1xf32>
    %24 = vector.broadcast %23 : vector<16x1xf32> to vector<16x128xf32>
    %25 = arith.mulf %15, %24 : vector<16x128xf32>
    %26 = vector.broadcast %6 : vector<1x128xf32> to vector<16x128xf32>
    %27 = arith.mulf %25, %26 : vector<16x128xf32>
    %28 = vector.broadcast %7 : vector<1x128xf32> to vector<16x128xf32>
    %29 = arith.addf %27, %28 : vector<16x128xf32>
    %30 = arith.truncf %29 : vector<16x128xf32> to vector<16x128xbf16>
    %c0_9 = arith.constant 0 : index
    %c0_10 = arith.constant 0 : index
    %31 = vector.load %arg2[%c0_9, %c0_10] : memref<128x128xbf16, #tpu.memory_space<vmem>>, vector<128x128xbf16>
    %cst_11 = arith.constant dense<0.000000e+00> : vector<16x128xf32>
    %32 = tpu.matmul %30, %31, %cst_11 {dimension_numbers = #tpu.dot_dimension_numbers<[1], [0], [0], [1], [0, 0, 1, 1], [], []>} : vector<16x128xbf16>, vector<128x128xbf16>, vector<16x128xf32> -> vector<16x128xf32>
    %c0_12 = arith.constant 0 : index
    %c0_13 = arith.constant 0 : index
    %33 = vector.load %arg3[%c0_12, %c0_13] : memref<1x128xf32, #tpu.memory_space<vmem>>, vector<1x128xf32>
    %34 = vector.broadcast %33 : vector<1x128xf32> to vector<16x128xf32>
    %35 = arith.addf %32, %34 : vector<16x128xf32>
    %cst_14 = arith.constant 5.000000e-01 : f32
    %36 = vector.broadcast %cst_14 : f32 to vector<16x128xf32>
    %37 = arith.mulf %36, %35 : vector<16x128xf32>
    %cst_15 = arith.constant 0.707106769 : f32
    %38 = vector.broadcast %cst_15 : f32 to vector<16x128xf32>
    %39 = arith.mulf %35, %38 : vector<16x128xf32>
    %40 = math.erf %39 : vector<16x128xf32>
    %cst_16 = arith.constant 1.000000e+00 : f32
    %41 = vector.broadcast %cst_16 : f32 to vector<16x128xf32>
    %42 = arith.addf %41, %40 : vector<16x128xf32>
    %43 = arith.mulf %37, %42 : vector<16x128xf32>
    %44 = arith.truncf %43 : vector<16x128xf32> to vector<16x128xbf16>
    %c0_17 = arith.constant 0 : index
    %c0_18 = arith.constant 0 : index
    %45 = vector.load %arg4[%c0_17, %c0_18] : memref<128x128xbf16, #tpu.memory_space<vmem>>, vector<128x128xbf16>
    %cst_19 = arith.constant dense<0.000000e+00> : vector<16x128xf32>
    %46 = tpu.matmul %44, %45, %cst_19 {dimension_numbers = #tpu.dot_dimension_numbers<[1], [0], [0], [1], [0, 0, 1, 1], [], []>} : vector<16x128xbf16>, vector<128x128xbf16>, vector<16x128xf32> -> vector<16x128xf32>
    %c0_20 = arith.constant 0 : index
    %c0_21 = arith.constant 0 : index
    %47 = vector.load %arg5[%c0_20, %c0_21] : memref<1x128xf32, #tpu.memory_space<vmem>>, vector<1x128xf32>
    %48 = vector.broadcast %47 : vector<1x128xf32> to vector<16x128xf32>
    %49 = arith.addf %46, %48 : vector<16x128xf32>
    %c0_22 = arith.constant 0 : index
    %c0_23 = arith.constant 0 : index
    %50 = vector.load %arg8[%c0_22, %c0_23] : memref<1x128xf32, #tpu.memory_space<vmem>>, vector<1x128xf32>
    %c0_24 = arith.constant 0 : index
    %c0_25 = arith.constant 0 : index
    %51 = vector.load %arg9[%c0_24, %c0_25] : memref<1x128xf32, #tpu.memory_space<vmem>>, vector<1x128xf32>
    %cst_26 = arith.constant dense<0.000000e+00> : vector<16xf32>
    %52 = vector.multi_reduction <add>, %49, %cst_26 [1] : vector<16x128xf32> to vector<16xf32>
    %53 = vector.shape_cast %52 : vector<16xf32> to vector<16x1xf32>
    %cst_27 = arith.constant 3.125000e-02 : f32
    %54 = vector.broadcast %cst_27 : f32 to vector<16x1xf32>
    %55 = arith.mulf %53, %54 : vector<16x1xf32>
    %56 = vector.broadcast %55 : vector<16x1xf32> to vector<16x128xf32>
    %57 = arith.subf %49, %56 : vector<16x128xf32>
    %58 = vector.broadcast %5 : vector<1x128xf32> to vector<16x128xf32>
    %59 = arith.mulf %57, %58 : vector<16x128xf32>
    %60 = arith.mulf %59, %59 : vector<16x128xf32>
    %cst_28 = arith.constant dense<0.000000e+00> : vector<16xf32>
    %61 = vector.multi_reduction <add>, %60, %cst_28 [1] : vector<16x128xf32> to vector<16xf32>
    %62 = vector.shape_cast %61 : vector<16xf32> to vector<16x1xf32>
    %cst_29 = arith.constant 3.125000e-02 : f32
    %63 = vector.broadcast %cst_29 : f32 to vector<16x1xf32>
    %64 = arith.mulf %62, %63 : vector<16x1xf32>
    %cst_30 = arith.constant 9.99999974E-6 : f32
    %65 = vector.broadcast %cst_30 : f32 to vector<16x1xf32>
    %66 = arith.addf %64, %65 : vector<16x1xf32>
    %67 = math.rsqrt %66 : vector<16x1xf32>
    %68 = vector.broadcast %67 : vector<16x1xf32> to vector<16x128xf32>
    %69 = arith.mulf %59, %68 : vector<16x128xf32>
    %70 = vector.broadcast %50 : vector<1x128xf32> to vector<16x128xf32>
    %71 = arith.mulf %69, %70 : vector<16x128xf32>
    %72 = vector.broadcast %51 : vector<1x128xf32> to vector<16x128xf32>
    %73 = arith.addf %71, %72 : vector<16x128xf32>
    %cst_31 = arith.constant 5.000000e-01 : f32
    %74 = vector.broadcast %cst_31 : f32 to vector<16x128xf32>
    %75 = arith.mulf %74, %73 : vector<16x128xf32>
    %cst_32 = arith.constant 0.707106769 : f32
    %76 = vector.broadcast %cst_32 : f32 to vector<16x128xf32>
    %77 = arith.mulf %73, %76 : vector<16x128xf32>
    %78 = math.erf %77 : vector<16x128xf32>
    %cst_33 = arith.constant 1.000000e+00 : f32
    %79 = vector.broadcast %cst_33 : f32 to vector<16x128xf32>
    %80 = arith.addf %79, %78 : vector<16x128xf32>
    %81 = arith.mulf %75, %80 : vector<16x128xf32>
    %c0_34 = arith.constant 0 : index
    %c0_35 = arith.constant 0 : index
    %82 = vector.load %arg10[%c0_34, %c0_35] : memref<16x128xf32, #tpu.memory_space<vmem>>, vector<16x128xf32>
    tpu.vector_store %arg10[%c0_34, %c0_35], %81 {strides = array<i32>} : memref<16x128xf32, #tpu.memory_space<vmem>>, vector<16x128xf32>,
    return
  }
  func.func @transform_0(%arg0: i32) -> (i32, i32) {
    %c0_i32 = arith.constant 0 : i32
    %c0_i32_0 = arith.constant 0 : i32
    return %arg0, %c0_i32 : i32, i32
  }
  func.func @transform_1(%arg0: i32) -> (i32, i32) {
    %c0_i32 = arith.constant 0 : i32
    %c0_i32_0 = arith.constant 0 : i32
    %c0_i32_1 = arith.constant 0 : i32
    return %c0_i32, %c0_i32_0 : i32, i32
  }
  func.func @transform_2(%arg0: i32) -> (i32, i32) {
    %c0_i32 = arith.constant 0 : i32
    %c0_i32_0 = arith.constant 0 : i32
    %c0_i32_1 = arith.constant 0 : i32
    return %c0_i32, %c0_i32_0 : i32, i32
  }
  func.func @transform_3(%arg0: i32) -> (i32, i32) {
    %c0_i32 = arith.constant 0 : i32
    %c0_i32_0 = arith.constant 0 : i32
    %c0_i32_1 = arith.constant 0 : i32
    return %c0_i32, %c0_i32_0 : i32, i32
  }
  func.func @transform_4(%arg0: i32) -> (i32, i32) {
    %c0_i32 = arith.constant 0 : i32
    %c0_i32_0 = arith.constant 0 : i32
    %c0_i32_1 = arith.constant 0 : i32
    return %c0_i32, %c0_i32_0 : i32, i32
  }
  func.func @transform_5(%arg0: i32) -> (i32, i32) {
    %c0_i32 = arith.constant 0 : i32
    %c0_i32_0 = arith.constant 0 : i32
    %c0_i32_1 = arith.constant 0 : i32
    return %c0_i32, %c0_i32_0 : i32, i32
  }
  func.func @transform_6(%arg0: i32) -> (i32, i32) {
    %c0_i32 = arith.constant 0 : i32
    %c0_i32_0 = arith.constant 0 : i32
    %c0_i32_1 = arith.constant 0 : i32
    return %c0_i32, %c0_i32_0 : i32, i32
  }
  func.func @transform_7(%arg0: i32) -> (i32, i32) {
    %c0_i32 = arith.constant 0 : i32
    %c0_i32_0 = arith.constant 0 : i32
    %c0_i32_1 = arith.constant 0 : i32
    return %c0_i32, %c0_i32_0 : i32, i32
  }
  func.func @transform_8(%arg0: i32) -> (i32, i32) {
    %c0_i32 = arith.constant 0 : i32
    %c0_i32_0 = arith.constant 0 : i32
    %c0_i32_1 = arith.constant 0 : i32
    return %c0_i32, %c0_i32_0 : i32, i32
  }
  func.func @transform_9(%arg0: i32) -> (i32, i32) {
    %c0_i32 = arith.constant 0 : i32
    %c0_i32_0 = arith.constant 0 : i32
    return %arg0, %c0_i32 : i32, i32
  }
}

</mosaic_0001>

<llo_original>
// kernel: tpu_custom_call.1
$region0: #{tpu_custom_call.1}
  #allocation0 [shape = 'u32[]', space=smem, size = 0x4, offset = 0x4, fixed_abs, tag = 'smem constant byte address 0x4 - core index']
  #allocation1 [shape = 'u32[144,128]{1,0:T(1,128)}', space=vmem, size = 0x12000, scoped, tag = 'internal scratch']
  %s0 = inlined_call_operand.hbm [shape: f32[16,128], index: 0, kind: input, shape index: {}]
  %s1 = inlined_call_operand.hbm [shape: bf16[128,128], index: 1, kind: input, shape index: {}]
  %s2 = inlined_call_operand.vmem [shape: f32[1,128], index: 2, kind: input, shape index: {}]
  %s3 = inlined_call_operand.hbm [shape: bf16[128,128], index: 3, kind: input, shape index: {}]
  %s4 = inlined_call_operand.vmem [shape: f32[1,128], index: 4, kind: input, shape index: {}]
  %s5 = inlined_call_operand.vmem [shape: f32[1,128], index: 5, kind: input, shape index: {}]
  %s6 = inlined_call_operand.vmem [shape: f32[1,128], index: 6, kind: input, shape index: {}]
  %s7 = inlined_call_operand.vmem [shape: f32[1,128], index: 7, kind: input, shape index: {}]
  %s8 = inlined_call_operand.vmem [shape: f32[1,128], index: 8, kind: input, shape index: {}]
  %s9 = inlined_call_operand.hbm [shape: f32[16,128], index: 9, kind: output, shape index: {}]
  %s10 = sld [smem:[#allocation0]]
  $region58: #{tpu_custom_call.1} parent=0
    _
  %s12 = ssub.s32 1, %s10
  %s13 = scalar_select 0, %s12, %s10
  $region1: #{tpu_custom_call.1} parent=0
    #allocation2 [shape = 'u8[8192]{0}', space=vmem, size = 0x2000, scoped, tag = 'input window, operand 0, single buffered']
    #allocation3 [shape = 's32[1]{0}', space=sflag, size = 0x4, scoped, tag = 'scoped memory for tpu_custom_call.1']
    #allocation4 [shape = 's32[1]{0}', space=sflag, size = 0x4, scoped, tag = 'scoped memory for tpu_custom_call.1']
    #allocation5 [shape = 'u8[32768]{0}', space=vmem, size = 0x8000, scoped, tag = 'input window, operand 1, single buffered']
    #allocation6 [shape = 's32[1]{0}', space=sflag, size = 0x4, scoped, tag = 'scoped memory for tpu_custom_call.1']
    #allocation7 [shape = 'u8[32768]{0}', space=vmem, size = 0x8000, scoped, tag = 'input window, operand 3, single buffered']
    #allocation8 [shape = 'u8[8192]{0}', space=vmem, size = 0x2000, scoped, tag = 'output window, operand 0, single buffered']
    %14 = vsyncpa [#allocation3], 0
    %15 = vsyncpa [#allocation6], 0
    %16 = vsyncpa [#allocation4], 0
    // Predicated region
    $region2: #{tpu_custom_call.1} parent=1 // pred_check
      _
    $region3: #{tpu_custom_call.1} parent=1 // pred_check_branch
      %18 = sbr.rel (0) target = $region5
    $region4: #{tpu_custom_call.1} parent=1 // pred_region
      %s20 = ssub.s32 256, 256
      %21 = vsyncadd [#allocation3], %s20
      %s22 = sshll.u32 [#allocation2], 4
      %s23 = int_to_ptr.vmem [resolvable:$true] %s22
      %28 = dma.hbm_to_vmem [thread:$0]  %s0, 256, %s23, [#allocation3], 128, 128, 8
    $region5: #{tpu_custom_call.1} parent=1 // pred_fallthru
      _
    // Predicated region
    $region6: #{tpu_custom_call.1} parent=1 // pred_check
      _
    $region7: #{tpu_custom_call.1} parent=1 // pred_check_branch
      %30 = sbr.rel (0) target = $region9
    $region8: #{tpu_custom_call.1} parent=1 // pred_region
      %s32 = ssub.s32 1024, 1024
      %33 = vsyncadd [#allocation6], %s32
      %s34 = sshll.u32 [#allocation5], 4
      %s35 = int_to_ptr.vmem [resolvable:$true] %s34
      %40 = dma.hbm_to_vmem [thread:$0]  %s1, 1024, %s35, [#allocation6], 64, 64, 4
    $region9: #{tpu_custom_call.1} parent=1 // pred_fallthru
      _
    // Predicated region
    $region10: #{tpu_custom_call.1} parent=1 // pred_check
      _
    $region11: #{tpu_custom_call.1} parent=1 // pred_check_branch
      %42 = sbr.rel (0) target = $region13
    $region12: #{tpu_custom_call.1} parent=1 // pred_region
      _
    $region13: #{tpu_custom_call.1} parent=1 // pred_fallthru
      _
    // Predicated region
    $region14: #{tpu_custom_call.1} parent=1 // pred_check
      _
    $region15: #{tpu_custom_call.1} parent=1 // pred_check_branch
      %44 = sbr.rel (0) target = $region17
    $region16: #{tpu_custom_call.1} parent=1 // pred_region
      %s46 = ssub.s32 1024, 1024
      %47 = vsyncadd [#allocation6], %s46
      %s48 = sshll.u32 [#allocation7], 4
      %s49 = int_to_ptr.vmem [resolvable:$true] %s48
      %54 = dma.hbm_to_vmem [thread:$0]  %s3, 1024, %s49, [#allocation6], 64, 64, 4
    $region17: #{tpu_custom_call.1} parent=1 // pred_fallthru
      _
    // Predicated region
    $region18: #{tpu_custom_call.1} parent=1 // pred_check
      _
    $region19: #{tpu_custom_call.1} parent=1 // pred_check_branch
      %56 = sbr.rel (0) target = $region21
    $region20: #{tpu_custom_call.1} parent=1 // pred_region
      _
    $region21: #{tpu_custom_call.1} parent=1 // pred_fallthru
      _
    // Predicated region
    $region22: #{tpu_custom_call.1} parent=1 // pred_check
      _
    $region23: #{tpu_custom_call.1} parent=1 // pred_check_branch
      %58 = sbr.rel (0) target = $region25
    $region24: #{tpu_custom_call.1} parent=1 // pred_region
      _
    $region25: #{tpu_custom_call.1} parent=1 // pred_fallthru
      _
    // Predicated region
    $region26: #{tpu_custom_call.1} parent=1 // pred_check
      _
    $region27: #{tpu_custom_call.1} parent=1 // pred_check_branch
      %60 = sbr.rel (0) target = $region29
    $region28: #{tpu_custom_call.1} parent=1 // pred_region
      _
    $region29: #{tpu_custom_call.1} parent=1 // pred_fallthru
      _
    // Predicated region
    $region30: #{tpu_custom_call.1} parent=1 // pred_check
      _
    $region31: #{tpu_custom_call.1} parent=1 // pred_check_branch
      %62 = sbr.rel (0) target = $region33
    $region32: #{tpu_custom_call.1} parent=1 // pred_region
      _
    $region33: #{tpu_custom_call.1} parent=1 // pred_fallthru
      _
    // Predicated region
    $region34: #{tpu_custom_call.1} parent=1 // pred_check
      _
    $region35: #{tpu_custom_call.1} parent=1 // pred_check_branch
      %64 = sbr.rel (0) target = $region37
    $region36: #{tpu_custom_call.1} parent=1 // pred_region
      _
    $region37: #{tpu_custom_call.1} parent=1 // pred_fallthru
      _
    // Predicated region
    $region38: #{tpu_custom_call.1} parent=1 // pred_check
      _
    $region39: #{tpu_custom_call.1} parent=1 // pred_check_branch
      %66 = sbr.rel (0) target = $region41
    $region40: #{tpu_custom_call.1} parent=1 // pred_region
      %67 = dma.done [#allocation3], 256
    $region41: #{tpu_custom_call.1} parent=1 // pred_fallthru
      _
    // Predicated region
    $region42: #{tpu_custom_call.1} parent=1 // pred_check
      _
    $region43: #{tpu_custom_call.1} parent=1 // pred_check_branch
      %69 = sbr.rel (0) target = $region45
    $region44: #{tpu_custom_call.1} parent=1 // pred_region
      %70 = dma.done [#allocation6], 1024
    $region45: #{tpu_custom_call.1} parent=1 // pred_fallthru
      _
    // Predicated region
    $region46: #{tpu_custom_call.1} parent=1 // pred_check
      _
    $region47: #{tpu_custom_call.1} parent=1 // pred_check_branch
      %72 = sbr.rel (0) target = $region49
    $region48: #{tpu_custom_call.1} parent=1 // pred_region
      %73 = dma.done [#allocation6], 1024
    $region49: #{tpu_custom_call.1} parent=1 // pred_fallthru
      _
    %v75 = vld [vmem:[#allocation2] sm:$0xff]
    %v76 = vld [vmem:[#allocation2 + $0x8] sm:$0xff]
    %v77 = vlaneseq
    %v78 = vand.u32 %v77, 127
    %vm79 = vcmp.lt.s32.totalorder %v78, 32
    %v80 = vsel %vm79, 1, 0
    %v81 = vcvt.s32.f32 %v80
    %v82 = vld [vmem:[%s5] sm:$0x1]
    %v83 = vld [vmem:[%s6] sm:$0x1]
    %84 = vadd.xlane.f32.xlu0 %v75
    %v85 = vpop.xlane.xlu0 %84
    %86 = vadd.xlane.f32.xlu0 %v76
    %v87 = vpop.xlane.xlu0 %86
    %v88 = vmul.f32 %v85, 0.03125
    %v89 = vmul.f32 %v87, 0.03125
    %v90 = vsub.f32 %v75, %v88
    %v91 = vsub.f32 %v76, %v89
    %v92 = vmul.f32 %v90, %v81
    %v93 = vmul.f32 %v91, %v81
    %v94 = vmul.f32 %v92, %v92
    %v95 = vmul.f32 %v93, %v93
    %96 = vadd.xlane.f32.xlu0 %v94
    %v97 = vpop.xlane.xlu0 %96
    %98 = vadd.xlane.f32.xlu0 %v95
    %v99 = vpop.xlane.xlu0 %98
    %v100 = vmul.f32 %v97, 0.03125
    %v101 = vmul.f32 %v99, 0.03125
    %v102 = vadd.f32 %v100, 1e-05
    %v103 = vadd.f32 %v101, 1e-05
    %v104 = vrsqrt.pop %v102
    %v105 = vrsqrt.pop %v103
    %v106 = vmul.f32 %v92, %v104
    %v107 = vmul.f32 %v93, %v105
    %v109 = vlaneseq
    %v110 = vshrl.u32 %v109, 7
    %v111 = vsub.s32 0, %v110
    %v112 = vrot.slane %v82, %v111
    %v114 = vmul.f32 %v106, %v112
    %v115 = vmul.f32 %v107, %v112
    %v117 = vlaneseq
    %v118 = vshrl.u32 %v117, 7
    %v119 = vsub.s32 0, %v118
    %v120 = vrot.slane %v83, %v119
    %v122 = vadd.f32 %v114, %v120
    %v123 = vadd.f32 %v115, %v120
    %v124 = vpack.c.bf16 %v123, %v122
    %v125 = vld [vmem:[#allocation5] sm:$0xf]
    %v126 = vld [vmem:[#allocation5 + $0x4] sm:$0xf]
    %v127 = vld [vmem:[#allocation5 + $0x8] sm:$0xf]
    %v128 = vld [vmem:[#allocation5 + $0xc] sm:$0xf]
    %v129 = vld [vmem:[#allocation5 + $0x10] sm:$0xf]
    %v130 = vld [vmem:[#allocation5 + $0x14] sm:$0xf]
    %v131 = vld [vmem:[#allocation5 + $0x18] sm:$0xf]
    %v132 = vld [vmem:[#allocation5 + $0x1c] sm:$0xf]
    %v133 = vld [vmem:[#allocation5 + $0x20] sm:$0xf]
    %v134 = vld [vmem:[#allocation5 + $0x24] sm:$0xf]
    %v135 = vld [vmem:[#allocation5 + $0x28] sm:$0xf]
    %v136 = vld [vmem:[#allocation5 + $0x2c] sm:$0xf]
    %v137 = vld [vmem:[#allocation5 + $0x30] sm:$0xf]
    %v138 = vld [vmem:[#allocation5 + $0x34] sm:$0xf]
    %v139 = vld [vmem:[#allocation5 + $0x38] sm:$0xf]
    %v140 = vld [vmem:[#allocation5 + $0x3c] sm:$0xf]
    %v141 = vld [vmem:[%s2] sm:$0x1]
    %v143 = vlaneseq
    %v144 = vshrl.u32 %v143, 7
    %v145 = vsub.s32 0, %v144
    %v146 = vrot.slane %v141, %v145
    %v164 = vunpack.c.l.b16 %v125
    %v165 = vunpack.c.l.b16 %v126
    %v166 = vunpack.c.l.b16 %v127
    %v167 = vunpack.c.l.b16 %v128
    %v168 = vunpack.c.l.b16 %v129
    %v169 = vunpack.c.l.b16 %v130
    %v170 = vunpack.c.l.b16 %v131
    %v171 = vunpack.c.l.b16 %v132
    %v172 = vunpack.c.l.b16 %v133
    %v173 = vunpack.c.l.b16 %v134
    %v174 = vunpack.c.l.b16 %v135
    %v175 = vunpack.c.l.b16 %v136
    %v176 = vunpack.c.l.b16 %v137
    %v177 = vunpack.c.l.b16 %v138
    %v178 = vunpack.c.l.b16 %v139
    %v179 = vunpack.c.l.b16 %v140
    %v180 = vpack.c.b16 %v165, %v164
    %v181 = vpack.c.b16 %v167, %v166
    %v182 = vpack.c.b16 %v169, %v168
    %v183 = vpack.c.b16 %v171, %v170
    %v184 = vpack.c.b16 %v173, %v172
    %v185 = vpack.c.b16 %v175, %v174
    %v186 = vpack.c.b16 %v177, %v176
    %v187 = vpack.c.b16 %v179, %v178
    %196 = vmatprep.subr.bf16.mxu0 0
    %197 = vmatpush1.bf16.msra.mxu0 %v180
    %198 = vmatprep.subr.bf16.mxu0 0
    %199 = vmatpush1.bf16.msra.mxu0 %v181
    %200 = vmatprep.subr.bf16.mxu0 0
    %201 = vmatpush1.bf16.msra.mxu0 %v182
    %202 = vmatprep.subr.bf16.mxu0 0
    %203 = vmatpush1.bf16.msra.mxu0 %v183
    %204 = vmatprep.subr.bf16.mxu0 0
    %205 = vmatpush1.bf16.msra.mxu0 %v184
    %206 = vmatprep.subr.bf16.mxu0 0
    %207 = vmatpush1.bf16.msra.mxu0 %v185
    %208 = vmatprep.subr.bf16.mxu0 0
    %209 = vmatpush1.bf16.msra.mxu0 %v186
    %210 = vmatprep.subr.bf16.mxu0 0
    %211 = vmatpush1.bf16.msra.mxu0 %v187
    %212 = vmatprep.subr.bf16.mxu0 0
    %213 = vmatpush1.bf16.msra.mxu0 0
    %214 = vmatprep.subr.bf16.mxu0 0
    %215 = vmatpush1.bf16.msra.mxu0 0
    %216 = vmatprep.subr.bf16.mxu0 0
    %217 = vmatpush1.bf16.msra.mxu0 0
    %218 = vmatprep.subr.bf16.mxu0 0
    %219 = vmatpush1.bf16.msra.mxu0 0
    %220 = vmatprep.subr.bf16.mxu0 0
    %221 = vmatpush1.bf16.msra.mxu0 0
    %222 = vmatprep.subr.bf16.mxu0 0
    %223 = vmatpush1.bf16.msra.mxu0 0
    %224 = vmatprep.subr.bf16.mxu0 0
    %225 = vmatpush1.bf16.msra.mxu0 0
    %226 = vmatprep.subr.bf16.mxu0 0
    %227 = vmatpush1.bf16.msra.mxu0 0
    %228 = vmatprep.mubr.bf16.mxu0 0
    %229 = vmatmul.mubr.bf16.gmra.mrb[0].mxu0 %v124
    %v230 = vpop.f32.mrb[0].mxu0
    %v231 = vadd.f32 %v146, %v230
    %v232 = vpop.f32.mrb[0].mxu0
    %v233 = vpop.f32.mrb[0].mxu0
    %v234 = vadd.f32 %v146, %v233
    %v235 = vpop.f32.mrb[0].mxu0
    %236 = vdwg.mxu0
    %v237 = vmul.f32 %v231, 0.5
    %v238 = vmul.f32 %v234, 0.5
    %v239 = vmul.f32 %v231, 0.70710677
    %v240 = vmul.f32 %v234, 0.70710677
    %v241 = verf.f32.pop %v239
    %v242 = verf.f32.pop %v240
    %v243 = vadd.f32 %v241, 1.0
    %v244 = vadd.f32 %v242, 1.0
    %v245 = vmul.f32 %v237, %v243
    %v246 = vmul.f32 %v238, %v244
    %v247 = vpack.c.bf16 %v246, %v245
    %v248 = vld [vmem:[#allocation7] sm:$0xf]
    %v249 = vld [vmem:[#allocation7 + $0x4] sm:$0xf]
    %v250 = vld [vmem:[#allocation7 + $0x8] sm:$0xf]
    %v251 = vld [vmem:[#allocation7 + $0xc] sm:$0xf]
    %v252 = vld [vmem:[#allocation7 + $0x10] sm:$0xf]
    %v253 = vld [vmem:[#allocation7 + $0x14] sm:$0xf]
    %v254 = vld [vmem:[#allocation7 + $0x18] sm:$0xf]
    %v255 = vld [vmem:[#allocation7 + $0x1c] sm:$0xf]
    %v256 = vld [vmem:[#allocation7 + $0x20] sm:$0xf]
    %v257 = vld [vmem:[#allocation7 + $0x24] sm:$0xf]
    %v258 = vld [vmem:[#allocation7 + $0x28] sm:$0xf]
    %v259 = vld [vmem:[#allocation7 + $0x2c] sm:$0xf]
    %v260 = vld [vmem:[#allocation7 + $0x30] sm:$0xf]
    %v261 = vld [vmem:[#allocation7 + $0x34] sm:$0xf]
    %v262 = vld [vmem:[#allocation7 + $0x38] sm:$0xf]
    %v263 = vld [vmem:[#allocation7 + $0x3c] sm:$0xf]
    %v264 = vld [vmem:[%s4] sm:$0x1]
    %v266 = vlaneseq
    %v267 = vshrl.u32 %v266, 7
    %v268 = vsub.s32 0, %v267
    %v269 = vrot.slane %v264, %v268
    %v287 = vunpack.c.l.b16 %v248
    %v288 = vunpack.c.l.b16 %v249
    %v289 = vunpack.c.l.b16 %v250
    %v290 = vunpack.c.l.b16 %v251
    %v291 = vunpack.c.l.b16 %v252
    %v292 = vunpack.c.l.b16 %v253
    %v293 = vunpack.c.l.b16 %v254
    %v294 = vunpack.c.l.b16 %v255
    %v295 = vunpack.c.l.b16 %v256
    %v296 = vunpack.c.l.b16 %v257
    %v297 = vunpack.c.l.b16 %v258
    %v298 = vunpack.c.l.b16 %v259
    %v299 = vunpack.c.l.b16 %v260
    %v300 = vunpack.c.l.b16 %v261
    %v301 = vunpack.c.l.b16 %v262
    %v302 = vunpack.c.l.b16 %v263
    %v303 = vpack.c.b16 %v288, %v287
    %v304 = vpack.c.b16 %v290, %v289
    %v305 = vpack.c.b16 %v292, %v291
    %v306 = vpack.c.b16 %v294, %v293
    %v307 = vpack.c.b16 %v296, %v295
    %v308 = vpack.c.b16 %v298, %v297
    %v309 = vpack.c.b16 %v300, %v299
    %v310 = vpack.c.b16 %v302, %v301
    %319 = vmatprep.subr.bf16.mxu0 0
    %320 = vmatpush1.bf16.msra.mxu0 %v303
    %321 = vmatprep.subr.bf16.mxu0 0
    %322 = vmatpush1.bf16.msra.mxu0 %v304
    %323 = vmatprep.subr.bf16.mxu0 0
    %324 = vmatpush1.bf16.msra.mxu0 %v305
    %325 = vmatprep.subr.bf16.mxu0 0
    %326 = vmatpush1.bf16.msra.mxu0 %v306
    %327 = vmatprep.subr.bf16.mxu0 0
    %328 = vmatpush1.bf16.msra.mxu0 %v307
    %329 = vmatprep.subr.bf16.mxu0 0
    %330 = vmatpush1.bf16.msra.mxu0 %v308
    %331 = vmatprep.subr.bf16.mxu0 0
    %332 = vmatpush1.bf16.msra.mxu0 %v309
    %333 = vmatprep.subr.bf16.mxu0 0
    %334 = vmatpush1.bf16.msra.mxu0 %v310
    %335 = vmatprep.subr.bf16.mxu0 0
    %336 = vmatpush1.bf16.msra.mxu0 0
    %337 = vmatprep.subr.bf16.mxu0 0
    %338 = vmatpush1.bf16.msra.mxu0 0
    %339 = vmatprep.subr.bf16.mxu0 0
    %340 = vmatpush1.bf16.msra.mxu0 0
    %341 = vmatprep.subr.bf16.mxu0 0
    %342 = vmatpush1.bf16.msra.mxu0 0
    %343 = vmatprep.subr.bf16.mxu0 0
    %344 = vmatpush1.bf16.msra.mxu0 0
    %345 = vmatprep.subr.bf16.mxu0 0
    %346 = vmatpush1.bf16.msra.mxu0 0
    %347 = vmatprep.subr.bf16.mxu0 0
    %348 = vmatpush1.bf16.msra.mxu0 0
    %349 = vmatprep.subr.bf16.mxu0 0
    %350 = vmatpush1.bf16.msra.mxu0 0
    %351 = vmatprep.mubr.bf16.mxu0 0
    %352 = vmatmul.mubr.bf16.gmra.mrb[0].mxu0 %v247
    %v353 = vpop.f32.mrb[0].mxu0
    %v354 = vadd.f32 %v269, %v353
    %v355 = vpop.f32.mrb[0].mxu0
    %v356 = vpop.f32.mrb[0].mxu0
    %v357 = vadd.f32 %v269, %v356
    %v358 = vpop.f32.mrb[0].mxu0
    %359 = vdwg.mxu0
    %v360 = vld [vmem:[%s7] sm:$0x1]
    %v361 = vld [vmem:[%s8] sm:$0x1]
    %362 = vadd.xlane.f32.xlu0 %v354
    %v363 = vpop.xlane.xlu0 %362
    %364 = vadd.xlane.f32.xlu0 %v357
    %v365 = vpop.xlane.xlu0 %364
    %v366 = vmul.f32 %v363, 0.03125
    %v367 = vmul.f32 %v365, 0.03125
    %v368 = vsub.f32 %v354, %v366
    %v369 = vsub.f32 %v357, %v367
    %v370 = vmul.f32 %v368, %v81
    %v371 = vmul.f32 %v369, %v81
    %v372 = vmul.f32 %v370, %v370
    %v373 = vmul.f32 %v371, %v371
    %374 = vadd.xlane.f32.xlu0 %v372
    %v375 = vpop.xlane.xlu0 %374
    %376 = vadd.xlane.f32.xlu0 %v373
    %v377 = vpop.xlane.xlu0 %376
    %v378 = vmul.f32 %v375, 0.03125
    %v379 = vmul.f32 %v377, 0.03125
    %v380 = vadd.f32 %v378, 1e-05
    %v381 = vadd.f32 %v379, 1e-05
    %v382 = vrsqrt.pop %v380
    %v383 = vrsqrt.pop %v381
    %v384 = vmul.f32 %v370, %v382
    %v385 = vmul.f32 %v371, %v383
    %v387 = vlaneseq
    %v388 = vshrl.u32 %v387, 7
    %v389 = vsub.s32 0, %v388
    %v390 = vrot.slane %v360, %v389
    %v392 = vmul.f32 %v384, %v390
    %v393 = vmul.f32 %v385, %v390
    %v395 = vlaneseq
    %v396 = vshrl.u32 %v395, 7
    %v397 = vsub.s32 0, %v396
    %v398 = vrot.slane %v361, %v397
    %v400 = vadd.f32 %v392, %v398
    %v401 = vadd.f32 %v393, %v398
    %v402 = vmul.f32 %v400, 0.5
    %v403 = vmul.f32 %v401, 0.5
    %v404 = vmul.f32 %v400, 0.70710677
    %v405 = vmul.f32 %v401, 0.70710677
    %v406 = verf.f32.pop %v404
    %v407 = verf.f32.pop %v405
    %v408 = vadd.f32 %v406, 1.0
    %v409 = vadd.f32 %v407, 1.0
    %v410 = vmul.f32 %v402, %v408
    %v411 = vmul.f32 %v403, %v409
    %412 = vst [vmem:[#allocation8] sm:$0xff] %v410
    %413 = vst [vmem:[#allocation8 + $0x8] sm:$0xff] %v411
    // Predicated region
    $region50: #{tpu_custom_call.1} parent=1 // pred_check
      _
    $region51: #{tpu_custom_call.1} parent=1 // pred_check_branch
      %415 = sbr.rel (0) target = $region53
    $region52: #{tpu_custom_call.1} parent=1 // pred_region
      %s417 = ssub.s32 256, 256
      %418 = vsyncadd [#allocation4], %s417
      %s419 = sshll.u32 [#allocation8], 4
      %s420 = int_to_ptr.vmem [resolvable:$true] %s419
      %425 = dma.vmem_to_hbm [thread:$0]  %s420, 256, %s9, [#allocation4], 128, 128, 8
    $region53: #{tpu_custom_call.1} parent=1 // pred_fallthru
      _
    // Predicated region
    $region54: #{tpu_custom_call.1} parent=1 // pred_check
      _
    $region55: #{tpu_custom_call.1} parent=1 // pred_check_branch
      %427 = sbr.rel (0) target = $region57
    $region56: #{tpu_custom_call.1} parent=1 // pred_region
      %428 = dma.done [#allocation4], 256
    $region57: #{tpu_custom_call.1} parent=1 // pred_fallthru
      _
    %429 = vsyncpa [#allocation3], 1
    %430 = vsyncpa [#allocation6], 1
    %431 = vsyncpa [#allocation4], 1

</llo_original>
